<compile_context>
chip_gen: v6e
topology: v6e:2x2x1
jax: 0.10.0
libtpu: 0.0.40
codegen_flags: <defaults>
</compile_context>

<pallas_src>
import numpy as np
from math import pi

import jax
import jax.numpy as jnp
from jax.experimental import pallas as pl
from jax.experimental.pallas import tpu as pltpu


# --------------------------------------------------------------------------
# Interpolation kernels + contribution computation (numpy setup glue,
# identical math to the PyTorch reference __init__).
# --------------------------------------------------------------------------
def box(x):
    return ((-0.5 <= x) & (x < 0.5)) * 1.0


def cubic(x):
    absx = np.abs(x)
    absx2 = absx ** 2
    absx3 = absx ** 3
    return (1.5 * absx3 - 2.5 * absx2 + 1) * (absx <= 1) + (
        -0.5 * absx3 + 2.5 * absx2 - 4 * absx + 2
    ) * ((1 < absx) & (absx <= 2))


def lanczos2(x):
    return (
        (np.sin(pi * x) * np.sin(pi * x / 2) + np.finfo(np.float32).eps)
        / (pi ** 2 * x ** 2 / 2 + np.finfo(np.float32).eps)
    ) * (abs(x) < 2)


def lanczos3(x):
    return (
        (np.sin(pi * x) * np.sin(pi * x / 3) + np.finfo(np.float32).eps)
        / (pi ** 2 * x ** 2 / 3 + np.finfo(np.float32).eps)
    ) * (abs(x) < 3)


def linear(x):
    return (x + 1) * ((-1 <= x) & (x < 0)) + (1 - x) * ((0 <= x) & (x <= 1))


def fix_scale_and_size(input_shape, output_shape, scale_factor):
    if scale_factor is not None:
        if np.isscalar(scale_factor) and len(input_shape) > 1:
            scale_factor = [scale_factor, scale_factor]
        scale_factor = list(scale_factor)
        scale_factor = [1] * (len(input_shape) - len(scale_factor)) + scale_factor
    if output_shape is not None:
        output_shape = list(input_shape[len(output_shape):]) + list(
            np.int64(np.array(output_shape))
        )
    if scale_factor is None:
        scale_factor = 1.0 * np.array(output_shape) / np.array(input_shape)
    if output_shape is None:
        output_shape = np.int64(np.ceil(np.array(input_shape) * np.array(scale_factor)))
    return scale_factor, output_shape


def contributions(in_length, out_length, scale, kernel, kernel_width, antialiasing):
    fixed_kernel = (lambda arg: scale * kernel(scale * arg)) if antialiasing else kernel
    kernel_width *= 1.0 / scale if antialiasing else 1.0
    out_coordinates = np.arange(1, out_length + 1)
    shifted_out_coordinates = out_coordinates - (out_length - in_length * scale) / 2
    match_coordinates = shifted_out_coordinates / scale + 0.5 * (1 - 1 / scale)
    left_boundary = np.floor(match_coordinates - kernel_width / 2)
    expanded_kernel_width = np.ceil(kernel_width) + 2
    field_of_view = np.squeeze(
        np.int64(
            np.expand_dims(left_boundary, axis=1)
            + np.arange(expanded_kernel_width)
            - 1
        )
    )
    weights = fixed_kernel(
        1.0 * np.expand_dims(match_coordinates, axis=1) - field_of_view - 1
    )
    sum_weights = np.sum(weights, axis=1)
    sum_weights[sum_weights == 0] = 1.0
    weights = 1.0 * weights / np.expand_dims(sum_weights, axis=1)
    mirror = np.int64(
        np.concatenate((np.arange(in_length), np.arange(in_length - 1, -1, step=-1)))
    )
    field_of_view = mirror[np.mod(field_of_view, mirror.shape[0])]
    non_zero_out_pixels = np.nonzero(np.any(weights, axis=0))
    weights = np.squeeze(weights[:, non_zero_out_pixels])
    field_of_view = np.squeeze(field_of_view[:, non_zero_out_pixels])
    return weights, field_of_view


def _fix_contrib_shapes(weights, fov, out_len):
    """Disambiguate np.squeeze collapses so weights/fov are (out_len, kw)."""
    weights = np.asarray(weights, dtype=np.float64)
    fov = np.asarray(fov, dtype=np.int64)
    if weights.ndim == 0:
        weights = weights.reshape(1, 1)
        fov = fov.reshape(1, 1)
    elif weights.ndim == 1:
        if int(out_len) == 1:
            weights = weights.reshape(1, -1)
            fov = fov.reshape(1, -1)
        else:
            weights = weights.reshape(-1, 1)
            fov = fov.reshape(-1, 1)
    return weights.astype(np.float32), fov


# --------------------------------------------------------------------------
# Sizing helpers.
# --------------------------------------------------------------------------
_VMEM_LIMIT_CACHE = None


def _vmem_limit_bytes():
    """~75% of physical VMEM: ~48 MiB on v7x (64 MiB), ~96 MiB on v5e/v6e."""
    global _VMEM_LIMIT_CACHE
    if _VMEM_LIMIT_CACHE is None:
        cap = 64 * 1024 * 1024
        try:
            cap = int(pltpu.get_tpu_info().vmem_capacity_bytes)
        except Exception:
            pass
        _VMEM_LIMIT_CACHE = max(32 * 1024 * 1024,
                                min((cap * 3) // 4, 100 * 1024 * 1024))
    return _VMEM_LIMIT_CACHE


def _weight_spec(shape, index_map):
    """Single-buffered BlockSpec for grid-invariant weights (constant index_map):
    no point double-buffering a block that never changes."""
    try:
        return pl.BlockSpec(shape, index_map, pipeline_mode=pl.Buffered(1))
    except Exception:
        return pl.BlockSpec(shape, index_map)


def _pick_batch_block(B, per_item_bytes, fixed_bytes, budget_bytes,
                      min_split_bytes=2 * 1024 * 1024):
    """Largest divisor of B whose block fits the VMEM budget.  Prefer >=2 grid
    steps (v7x megacore) only when each step still carries substantial work."""
    divs = [d for d in range(1, B + 1) if B % d == 0]
    best = 1
    for d in divs:
        if fixed_bytes + d * per_item_bytes <= budget_bytes:
            best = d
    if best == B and B >= 2:
        cands = [d for d in divs
                 if d < B and fixed_bytes + d * per_item_bytes <= budget_bytes]
        if cands:
            d2 = max(cands)
            if d2 * per_item_bytes >= min_split_bytes:
                best = d2
    return best


def _rows_block(M, max_rows):
    """Sublane-aligned row block: largest multiple of 8 dividing M under the
    VMEM row budget (capped so medium/large M gets >=2 parallel blocks for the
    two v7x TensorCores); otherwise the full M (block == full dim is legal)."""
    cap = max(8, min(int(max_rows), 512))
    if M >= 64:
        cap = min(cap, max(8, (M // 2 // 8) * 8))
    best = None
    d = 8
    while d <= min(cap, M):
        if M % d == 0:
            best = d
        d += 8
    return best if best is not None else M


# --------------------------------------------------------------------------
# Kernel 1: fused H+W resize.  One grid step handles `bb` images.
# --------------------------------------------------------------------------
def _make_fused_kernel(bb, h_first, flat_ok):
    if h_first:
        def kernel(x_ref, wh_ref, wwt_ref, o_ref, tmp_ref):
            # Sublane-side (Wh) matmuls into disjoint scratch slices: independent,
            # no shared-tmp WAR hazard, so the MXU pipe stays full.
            for i in range(bb):
                tmp_ref[i] = jnp.dot(wh_ref[...], x_ref[i],
                                     preferred_element_type=jnp.float32)
            # Lane-side (Ww^T): keep the f32 intermediate, promote only the small
            # weight (avoids the big f32->bf16 cast on v5e; no-op in f32 mode).
            wwt = wwt_ref[...].astype(jnp.float32)
            if flat_ok:
                b, ho, wi = tmp_ref.shape
                flat = tmp_ref[...].reshape(b * ho, wi)
                res = jnp.dot(flat, wwt, preferred_element_type=jnp.float32)
                o_ref[...] = res.reshape(o_ref.shape).astype(o_ref.dtype)
            else:
                for i in range(bb):
                    o_ref[i] = jnp.dot(tmp_ref[i], wwt,
                                       preferred_element_type=jnp.float32
                                       ).astype(o_ref.dtype)
    else:
        def kernel(x_ref, wh_ref, wwt_ref, o_ref, tmp_ref):
            if flat_ok:
                b, hi, wi = x_ref.shape
                flat = x_ref[...].reshape(b * hi, wi)
                tmp_ref[...] = jnp.dot(flat, wwt_ref[...],
                                       preferred_element_type=jnp.float32
                                       ).reshape(tmp_ref.shape)
            else:
                for i in range(bb):
                    tmp_ref[i] = jnp.dot(x_ref[i], wwt_ref[...],
                                         preferred_element_type=jnp.float32)
            wh = wh_ref[...].astype(jnp.float32)
            for i in range(bb):
                o_ref[i] = jnp.dot(wh, tmp_ref[i],
                                   preferred_element_type=jnp.float32
                                   ).astype(o_ref.dtype)
    return kernel


def pallas_fused_resize_hw(x3, wh, wwt, h_first):
    """x3: (B, H_in, W_in); wh: (H_out, H_in); wwt: (W_in, W_out).
    Returns (B, H_out, W_out) float32 with out[b] = wh @ x3[b] @ wwt."""
    B, H_in, W_in = x3.shape
    H_out = wh.shape[0]
    W_out = wwt.shape[1]
    esz = x3.dtype.itemsize
    vmem = _vmem_limit_bytes()
    budget = int(vmem * 0.75)

    tmp_elems = H_out * W_in if h_first else H_in * W_out
    fixed = 2 * (H_out * H_in + W_in * W_out) * esz   # conservative: 2 bufs/weight
    per_img = 2 * H_in * W_in * esz + 2 * H_out * W_out * 4 + tmp_elems * 4
    bb = _pick_batch_block(B, per_img, fixed, budget)

    # The flat (single big MXU call) lane-side multiply needs the merged middle
    # dim to be sublane-aligned; otherwise keep per-image (still independent).
    flat_ok = (H_out % 8 == 0) if h_first else (H_in % 8 == 0)
    tmp_shape = (bb, H_out, W_in) if h_first else (bb, H_in, W_out)

    if h_first:
        flops = 2 * B * (H_out * H_in * W_in + H_out * W_in * W_out)
    else:
        flops = 2 * B * (H_in * W_in * W_out + H_out * H_in * W_out)
    bytes_acc = ((B * H_in * W_in + H_out * H_in + W_in * W_out) * esz
                 + B * H_out * W_out * 4)

    return pl.pallas_call(
        _make_fused_kernel(bb, h_first, flat_ok),
        out_shape=jax.ShapeDtypeStruct((B, H_out, W_out), jnp.float32),
        grid_spec=pltpu.PrefetchScalarGridSpec(
            num_scalar_prefetch=0,
            grid=(B // bb,),
            in_specs=[
                pl.BlockSpec((bb, H_in, W_in), lambda b: (b, 0, 0)),
                _weight_spec((H_out, H_in), lambda b: (0, 0)),
                _weight_spec((W_in, W_out), lambda b: (0, 0)),
            ],
            out_specs=pl.BlockSpec((bb, H_out, W_out), lambda b: (b, 0, 0)),
            scratch_shapes=[pltpu.VMEM(tmp_shape, jnp.float32)],
        ),
        compiler_params=pltpu.CompilerParams(
            dimension_semantics=("parallel",),
            vmem_limit_bytes=vmem),
        cost_estimate=pl.CostEstimate(
            flops=int(flops), transcendentals=0, bytes_accessed=int(bytes_acc)),
    )(x3, wh, wwt)


# --------------------------------------------------------------------------
# Kernel 2: resize a NON-last dim.  x viewed as (B', in_len, T); out[b] = W @ x[b].
# Trailing dims stay fused into the lane axis T -> zero transposes / moveaxis.
# --------------------------------------------------------------------------
def _make_leftmul_kernel(bb):
    def kernel(x_ref, w_ref, o_ref):
        for i in range(bb):
            o_ref[i] = jnp.dot(w_ref[...], x_ref[i],
                               preferred_element_type=jnp.float32).astype(o_ref.dtype)
    return kernel


def pallas_resize_middle_dim(x3, w):
    """x3: (B', K, T); w: (O, K).  Returns (B', O, T) float32."""
    Bp, K, T = x3.shape
    O = w.shape[0]
    esz = x3.dtype.itemsize
    vmem = _vmem_limit_bytes()
    budget = int(vmem * 0.75)
    fixed = 2 * O * K * esz

    tT = T
    if fixed + (2 * K * T * esz + 2 * O * T * 4) > budget and T % 128 == 0:
        cand = None
        t = 128
        while t < T:
            if T % t == 0 and fixed + (2 * K * t * esz + 2 * O * t * 4) <= budget:
                cand = t
            t += 128
        if cand is not None:
            tT = cand
    # TODO(synk): masked tail blocks for T not divisible by 128 when even the
    # full-T block exceeds the budget; we rely on the raised vmem limit instead.

    per_img = 2 * K * tT * esz + 2 * O * tT * 4
    bb = _pick_batch_block(Bp, per_img, fixed, budget)

    return pl.pallas_call(
        _make_leftmul_kernel(bb),
        out_shape=jax.ShapeDtypeStruct((Bp, O, T), jnp.float32),
        grid_spec=pltpu.PrefetchScalarGridSpec(
            num_scalar_prefetch=0,
            grid=(Bp // bb, T // tT),
            in_specs=[
                pl.BlockSpec((bb, K, tT), lambda b, t: (b, 0, t)),
                _weight_spec((O, K), lambda b, t: (0, 0)),
            ],
            out_specs=pl.BlockSpec((bb, O, tT), lambda b, t: (b, 0, t)),
        ),
        compiler_params=pltpu.CompilerParams(
            dimension_semantics=("parallel", "parallel"),
            vmem_limit_bytes=vmem),
    )(x3, w)


# --------------------------------------------------------------------------
# Kernel 3: resize the LAST dim.  (M, K) @ (K, N): full-K row blocks, no pads,
# no accumulator, no output de-pad slice (block dims equal full array dims).
# --------------------------------------------------------------------------
def _rightmul_kernel(x_ref, w_ref, o_ref):
    o_ref[...] = jnp.dot(x_ref[...], w_ref[...],
                         preferred_element_type=jnp.float32).astype(o_ref.dtype)


def pallas_resize_last_dim(x2, w):
    """x2: (M, K); w: (K, N).  Returns (M, N) float32."""
    M, K = x2.shape
    N = w.shape[1]
    esz = x2.dtype.itemsize
    vmem = _vmem_limit_bytes()
    budget = int(vmem * 0.75)
    fixed = 2 * K * N * esz
    per_row = 2 * K * esz + 2 * N * 4
    max_rows = max(8, (budget - fixed) // max(per_row, 1))
    bm = _rows_block(M, max_rows)
    # TODO(synk): K/N grid tiling for extreme in/out lengths that cannot fit a
    # single row block in VMEM.

    return pl.pallas_call(
        _rightmul_kernel,
        out_shape=jax.ShapeDtypeStruct((M, N), jnp.float32),
        grid_spec=pltpu.PrefetchScalarGridSpec(
            num_scalar_prefetch=0,
            grid=(M // bm,),
            in_specs=[
                pl.BlockSpec((bm, K), lambda i: (i, 0)),
                _weight_spec((K, N), lambda i: (0, 0)),
            ],
            out_specs=pl.BlockSpec((bm, N), lambda i: (i, 0)),
        ),
        compiler_params=pltpu.CompilerParams(
            dimension_semantics=("parallel",),
            vmem_limit_bytes=vmem),
    )(x2, w)


# --------------------------------------------------------------------------
# Resizer: weight / field-of-view construction mirroring the PyTorch module;
# forward pass runs the weighted gather-sum as dense MXU matmuls in Pallas.
# --------------------------------------------------------------------------
class ResizerPallas:
    def __init__(self, in_shape, scale_factor=None, output_shape=None,
                 kernel=None, antialiasing=True, precision="float32"):
        scale_factor, output_shape = fix_scale_and_size(in_shape, output_shape,
                                                        scale_factor)
        method, kernel_width = {
            "cubic": (cubic, 4.0),
            "lanczos2": (lanczos2, 4.0),
            "lanczos3": (lanczos3, 6.0),
            "box": (box, 1.0),
            "linear": (linear, 2.0),
            None: (cubic, 4.0),
        }.get(kernel)
        antialiasing = bool(antialiasing) and bool(np.any(np.array(scale_factor) < 1))
        sorted_dims = np.argsort(np.array(scale_factor))
        self.sorted_dims = [int(d) for d in sorted_dims if scale_factor[d] != 1]
        self.ndim = len(in_shape)
        self._wdtype = jnp.bfloat16 if precision == "bf16" else jnp.float32

        self.ref_params = []   # (weights.T, fov.T) for the numpy reference
        dense_np = {}          # dim -> dense (out_len, in_len) resize matrix
        for dim in self.sorted_dims:
            out_len = int(output_shape[dim])
            weights, fov = contributions(
                in_shape[dim], out_len, scale_factor[dim],
                method, kernel_width, antialiasing)
            weights, fov = _fix_contrib_shapes(weights, fov, out_len)
            kw = weights.shape[1]
            Wd = np.zeros((out_len, in_shape[dim]), dtype=np.float32)
            rows = np.repeat(np.arange(out_len)[:, None], kw, axis=1)
            np.add.at(Wd, (rows, fov), weights)       # duplicates (mirror) accumulate
            dense_np[dim] = Wd
            self.ref_params.append((weights.T.copy(), fov.T.copy()))

        self.out_lens = {d: dense_np[d].shape[0] for d in self.sorted_dims}

        # Fused fast path: both trailing dims resized (NCHW H and W).
        self._fused = (len(self.sorted_dims) == 2 and
                       set(self.sorted_dims) == {self.ndim - 2, self.ndim - 1})
        if self._fused:
            Wh = dense_np[self.ndim - 2]                    # (H_out, H_in)
            Ww = dense_np[self.ndim - 1]                    # (W_out, W_in)
            H_in, W_in = in_shape[self.ndim - 2], in_shape[self.ndim - 1]
            H_out, W_out = Wh.shape[0], Ww.shape[0]
            self._h_out, self._w_out = H_out, W_out
            self._wh = jnp.asarray(Wh, dtype=self._wdtype)
            self._wwt = jnp.asarray(Ww.T, dtype=self._wdtype)
            self._h_first = (self.sorted_dims[0] == self.ndim - 2)
            esz = np.dtype(self._wdtype).itemsize
            tmp_elems = H_out * W_in if self._h_first else H_in * W_out
            per_img = 2 * H_in * W_in * esz + 2 * H_out * W_out * 4 + tmp_elems * 4
            fixed = 2 * (H_out * H_in + W_in * W_out) * esz
            # TODO(synk): keep fusion with an N-tiled second matmul instead of
            # falling back when one image's footprint exceeds the VMEM budget.
            if fixed + per_img > int(_vmem_limit_bytes() * 0.75):
                self._fused = False

        # Per-dim matrices, pre-oriented for the kernel that consumes them.
        self._per_dim = []
        for dim in self.sorted_dims:
            Wd = dense_np[dim]
            if dim == self.ndim - 1:
                mat = jnp.asarray(Wd.T, dtype=self._wdtype)   # (in, out): right-mul
            else:
                mat = jnp.asarray(Wd, dtype=self._wdtype)     # (out, in): left-mul
            self._per_dim.append((dim, mat))

    def __call__(self, x):
        x = jnp.asarray(x).astype(self._wdtype)
        nd = x.ndim

        if self._fused:
            lead = x.shape[:-2]
            B = int(np.prod(lead)) if lead else 1
            x3 = x.reshape((B,) + x.shape[-2:])
            out3 = pallas_fused_resize_hw(x3, self._wh, self._wwt, self._h_first)
            return out3.reshape(lead + (self._h_out, self._w_out))

        for dim, mat in self._per_dim:
            shape = x.shape
            out_len = self.out_lens[dim]
            if dim == nd - 1:
                y = pallas_resize_last_dim(x.reshape(-1, shape[-1]), mat)
                x = y.reshape(shape[:-1] + (out_len,))
            else:
                Bp = int(np.prod(shape[:dim])) if dim > 0 else 1
                T = int(np.prod(shape[dim + 1:]))
                y = pallas_resize_middle_dim(x.reshape(Bp, shape[dim], T), mat)
                x = y.reshape(shape[:dim] + (out_len,) + shape[dim + 1:])
            x = x.astype(self._wdtype)
        return x.astype(jnp.float32)

    # Pure numpy reference reproducing the PyTorch forward (gather + sum).
    def reference(self, x_np):
        x = np.asarray(x_np, dtype=np.float32)
        for dim, (wT, fovT) in zip(self.sorted_dims, self.ref_params):
            x = np.swapaxes(x, dim, 0)
            w = wT.reshape(wT.shape + (1,) * (self.ndim - 1))
            x = np.sum(x[fovT] * w, axis=0)
            x = np.swapaxes(x, dim, 0)
        return x


if __name__ == "__main__":
    key = jax.random.PRNGKey(0)
    in_shape = (2, 4, 16, 16)
    x = jax.random.normal(key, in_shape, dtype=jnp.float32)

    # Test 1: downsample H and W by 2x (default cubic) — fused Wh @ X @ Ww^T kernel.
    resizer = ResizerPallas(in_shape, scale_factor=0.5)
    out = jax.block_until_ready(resizer(x))
    assert out.shape == (2, 4, 8, 8), out.shape
    np.testing.assert_allclose(np.asarray(out), resizer.reference(np.asarray(x)),
                               rtol=1e-5, atol=1e-5)

    # Test 2: resize H only — left-multiply kernel, no moveaxis / transposes.
    resizer_h = ResizerPallas(in_shape, scale_factor=[0.5, 1.0])
    out_h = jax.block_until_ready(resizer_h(x))
    assert out_h.shape == (2, 4, 8, 16), out_h.shape
    np.testing.assert_allclose(np.asarray(out_h), resizer_h.reference(np.asarray(x)),
                               rtol=1e-5, atol=1e-5)

    # Test 3: resize W only — right-multiply kernel, full-K row blocks, no pads.
    resizer_w = ResizerPallas(in_shape, scale_factor=[1.0, 0.5])
    out_w = jax.block_until_ready(resizer_w(x))
    assert out_w.shape == (2, 4, 16, 8), out_w.shape
    np.testing.assert_allclose(np.asarray(out_w), resizer_w.reference(np.asarray(x)),
                               rtol=1e-5, atol=1e-5)

    print("KERNEL_OK")
</pallas_src>

<mosaic_0001>
module attributes {stable_mosaic.version = 11 : i64} {
  func.func @kernel(%arg0: i32, %arg1: memref<8x16x16xf32, #tpu.memory_space<vmem>>, %arg2: memref<8x16xf32, #tpu.memory_space<vmem>>, %arg3: memref<16x8xf32, #tpu.memory_space<vmem>>, %arg4: memref<8x8x8xf32, #tpu.memory_space<vmem>>, %arg5: memref<8x16x8xf32, #tpu.memory_space<vmem>>) attributes {dimension_semantics = [#tpu.dimension_semantics<parallel>], iteration_bounds = array<i64: 1>, scalar_prefetch = 0 : i64, scratch_operands = 1 : i64, tpu.core_type = #tpu.core_type<tc>, window_params = [{transform_indices = @transform_0, window_bounds = array<i64: 8, 16, 16>}, {pipeline_mode = #tpu.pipeline_mode<synchronous>, transform_indices = @transform_1, window_bounds = array<i64: 8, 16>}, {pipeline_mode = #tpu.pipeline_mode<synchronous>, transform_indices = @transform_2, window_bounds = array<i64: 16, 8>}, {transform_indices = @transform_3, window_bounds = array<i64: 8, 8, 8>}]} {
    %c0 = arith.constant 0 : index
    %c0_0 = arith.constant 0 : index
    %c0_1 = arith.constant 0 : index
    %0 = vector.load %arg1[%c0, %c0_0, %c0_1] : memref<8x16x16xf32, #tpu.memory_space<vmem>>, vector<8x16x16xf32>
    %1 = vector.shape_cast %0 : vector<8x16x16xf32> to vector<128x16xf32>
    %c0_2 = arith.constant 0 : index
    %c0_3 = arith.constant 0 : index
    %2 = vector.load %arg3[%c0_2, %c0_3] : memref<16x8xf32, #tpu.memory_space<vmem>>, vector<16x8xf32>
    %cst = arith.constant dense<0.000000e+00> : vector<128x8xf32>
    %3 = tpu.matmul %1, %2, %cst {dimension_numbers = #tpu.dot_dimension_numbers<[1], [0], [0], [1], [0, 0, 1, 1], [], []>} : vector<128x16xf32>, vector<16x8xf32>, vector<128x8xf32> -> vector<128x8xf32>
    %4 = vector.shape_cast %3 : vector<128x8xf32> to vector<8x16x8xf32>
    %c0_4 = arith.constant 0 : index
    %c0_5 = arith.constant 0 : index
    %c0_6 = arith.constant 0 : index
    %5 = vector.load %arg5[%c0_4, %c0_5, %c0_6] : memref<8x16x8xf32, #tpu.memory_space<vmem>>, vector<8x16x8xf32>
    tpu.vector_store %arg5[%c0_4, %c0_5, %c0_6], %4 {strides = array<i32>} : memref<8x16x8xf32, #tpu.memory_space<vmem>>, vector<8x16x8xf32>,
    %c0_7 = arith.constant 0 : index
    %c0_8 = arith.constant 0 : index
    %6 = vector.load %arg2[%c0_7, %c0_8] : memref<8x16xf32, #tpu.memory_space<vmem>>, vector<8x16xf32>
    %c0_9 = arith.constant 0 : index
    %c0_10 = arith.constant 0 : index
    %c0_11 = arith.constant 0 : index
    %7 = vector.load %arg5[%c0_9, %c0_10, %c0_11] : memref<8x16x8xf32, #tpu.memory_space<vmem>>, vector<1x16x8xf32>
    %8 = vector.shape_cast %7 : vector<1x16x8xf32> to vector<16x8xf32>
    %cst_12 = arith.constant dense<0.000000e+00> : vector<8x8xf32>
    %9 = tpu.matmul %6, %8, %cst_12 {dimension_numbers = #tpu.dot_dimension_numbers<[1], [0], [0], [1], [0, 0, 1, 1], [], []>} : vector<8x16xf32>, vector<16x8xf32>, vector<8x8xf32> -> vector<8x8xf32>
    %c0_13 = arith.constant 0 : index
    %c0_14 = arith.constant 0 : index
    %c0_15 = arith.constant 0 : index
    %10 = vector.load %arg4[%c0_13, %c0_14, %c0_15] : memref<8x8x8xf32, #tpu.memory_space<vmem>>, vector<1x8x8xf32>
    %11 = vector.shape_cast %10 : vector<1x8x8xf32> to vector<8x8xf32>
    %12 = vector.shape_cast %9 : vector<8x8xf32> to vector<1x8x8xf32>
    tpu.vector_store %arg4[%c0_13, %c0_14, %c0_15], %12 {strides = array<i32>} : memref<8x8x8xf32, #tpu.memory_space<vmem>>, vector<1x8x8xf32>,
    %c1 = arith.constant 1 : index
    %c0_16 = arith.constant 0 : index
    %c0_17 = arith.constant 0 : index
    %13 = vector.load %arg5[%c1, %c0_16, %c0_17] : memref<8x16x8xf32, #tpu.memory_space<vmem>>, vector<1x16x8xf32>
    %14 = vector.shape_cast %13 : vector<1x16x8xf32> to vector<16x8xf32>
    %cst_18 = arith.constant dense<0.000000e+00> : vector<8x8xf32>
    %15 = tpu.matmul %6, %14, %cst_18 {dimension_numbers = #tpu.dot_dimension_numbers<[1], [0], [0], [1], [0, 0, 1, 1], [], []>} : vector<8x16xf32>, vector<16x8xf32>, vector<8x8xf32> -> vector<8x8xf32>
    %c1_19 = arith.constant 1 : index
    %c0_20 = arith.constant 0 : index
    %c0_21 = arith.constant 0 : index
    %16 = vector.load %arg4[%c1_19, %c0_20, %c0_21] : memref<8x8x8xf32, #tpu.memory_space<vmem>>, vector<1x8x8xf32>
    %17 = vector.shape_cast %16 : vector<1x8x8xf32> to vector<8x8xf32>
    %18 = vector.shape_cast %15 : vector<8x8xf32> to vector<1x8x8xf32>
    tpu.vector_store %arg4[%c1_19, %c0_20, %c0_21], %18 {strides = array<i32>} : memref<8x8x8xf32, #tpu.memory_space<vmem>>, vector<1x8x8xf32>,
    %c2 = arith.constant 2 : index
    %c0_22 = arith.constant 0 : index
    %c0_23 = arith.constant 0 : index
    %19 = vector.load %arg5[%c2, %c0_22, %c0_23] : memref<8x16x8xf32, #tpu.memory_space<vmem>>, vector<1x16x8xf32>
    %20 = vector.shape_cast %19 : vector<1x16x8xf32> to vector<16x8xf32>
    %cst_24 = arith.constant dense<0.000000e+00> : vector<8x8xf32>
    %21 = tpu.matmul %6, %20, %cst_24 {dimension_numbers = #tpu.dot_dimension_numbers<[1], [0], [0], [1], [0, 0, 1, 1], [], []>} : vector<8x16xf32>, vector<16x8xf32>, vector<8x8xf32> -> vector<8x8xf32>
    %c2_25 = arith.constant 2 : index
    %c0_26 = arith.constant 0 : index
    %c0_27 = arith.constant 0 : index
    %22 = vector.load %arg4[%c2_25, %c0_26, %c0_27] : memref<8x8x8xf32, #tpu.memory_space<vmem>>, vector<1x8x8xf32>
    %23 = vector.shape_cast %22 : vector<1x8x8xf32> to vector<8x8xf32>
    %24 = vector.shape_cast %21 : vector<8x8xf32> to vector<1x8x8xf32>
    tpu.vector_store %arg4[%c2_25, %c0_26, %c0_27], %24 {strides = array<i32>} : memref<8x8x8xf32, #tpu.memory_space<vmem>>, vector<1x8x8xf32>,
    %c3 = arith.constant 3 : index
    %c0_28 = arith.constant 0 : index
    %c0_29 = arith.constant 0 : index
    %25 = vector.load %arg5[%c3, %c0_28, %c0_29] : memref<8x16x8xf32, #tpu.memory_space<vmem>>, vector<1x16x8xf32>
    %26 = vector.shape_cast %25 : vector<1x16x8xf32> to vector<16x8xf32>
    %cst_30 = arith.constant dense<0.000000e+00> : vector<8x8xf32>
    %27 = tpu.matmul %6, %26, %cst_30 {dimension_numbers = #tpu.dot_dimension_numbers<[1], [0], [0], [1], [0, 0, 1, 1], [], []>} : vector<8x16xf32>, vector<16x8xf32>, vector<8x8xf32> -> vector<8x8xf32>
    %c3_31 = arith.constant 3 : index
    %c0_32 = arith.constant 0 : index
    %c0_33 = arith.constant 0 : index
    %28 = vector.load %arg4[%c3_31, %c0_32, %c0_33] : memref<8x8x8xf32, #tpu.memory_space<vmem>>, vector<1x8x8xf32>
    %29 = vector.shape_cast %28 : vector<1x8x8xf32> to vector<8x8xf32>
    %30 = vector.shape_cast %27 : vector<8x8xf32> to vector<1x8x8xf32>
    tpu.vector_store %arg4[%c3_31, %c0_32, %c0_33], %30 {strides = array<i32>} : memref<8x8x8xf32, #tpu.memory_space<vmem>>, vector<1x8x8xf32>,
    %c4 = arith.constant 4 : index
    %c0_34 = arith.constant 0 : index
    %c0_35 = arith.constant 0 : index
    %31 = vector.load %arg5[%c4, %c0_34, %c0_35] : memref<8x16x8xf32, #tpu.memory_space<vmem>>, vector<1x16x8xf32>
    %32 = vector.shape_cast %31 : vector<1x16x8xf32> to vector<16x8xf32>
    %cst_36 = arith.constant dense<0.000000e+00> : vector<8x8xf32>
    %33 = tpu.matmul %6, %32, %cst_36 {dimension_numbers = #tpu.dot_dimension_numbers<[1], [0], [0], [1], [0, 0, 1, 1], [], []>} : vector<8x16xf32>, vector<16x8xf32>, vector<8x8xf32> -> vector<8x8xf32>
    %c4_37 = arith.constant 4 : index
    %c0_38 = arith.constant 0 : index
    %c0_39 = arith.constant 0 : index
    %34 = vector.load %arg4[%c4_37, %c0_38, %c0_39] : memref<8x8x8xf32, #tpu.memory_space<vmem>>, vector<1x8x8xf32>
    %35 = vector.shape_cast %34 : vector<1x8x8xf32> to vector<8x8xf32>
    %36 = vector.shape_cast %33 : vector<8x8xf32> to vector<1x8x8xf32>
    tpu.vector_store %arg4[%c4_37, %c0_38, %c0_39], %36 {strides = array<i32>} : memref<8x8x8xf32, #tpu.memory_space<vmem>>, vector<1x8x8xf32>,
    %c5 = arith.constant 5 : index
    %c0_40 = arith.constant 0 : index
    %c0_41 = arith.constant 0 : index
    %37 = vector.load %arg5[%c5, %c0_40, %c0_41] : memref<8x16x8xf32, #tpu.memory_space<vmem>>, vector<1x16x8xf32>
    %38 = vector.shape_cast %37 : vector<1x16x8xf32> to vector<16x8xf32>
    %cst_42 = arith.constant dense<0.000000e+00> : vector<8x8xf32>
    %39 = tpu.matmul %6, %38, %cst_42 {dimension_numbers = #tpu.dot_dimension_numbers<[1], [0], [0], [1], [0, 0, 1, 1], [], []>} : vector<8x16xf32>, vector<16x8xf32>, vector<8x8xf32> -> vector<8x8xf32>
    %c5_43 = arith.constant 5 : index
    %c0_44 = arith.constant 0 : index
    %c0_45 = arith.constant 0 : index
    %40 = vector.load %arg4[%c5_43, %c0_44, %c0_45] : memref<8x8x8xf32, #tpu.memory_space<vmem>>, vector<1x8x8xf32>
    %41 = vector.shape_cast %40 : vector<1x8x8xf32> to vector<8x8xf32>
    %42 = vector.shape_cast %39 : vector<8x8xf32> to vector<1x8x8xf32>
    tpu.vector_store %arg4[%c5_43, %c0_44, %c0_45], %42 {strides = array<i32>} : memref<8x8x8xf32, #tpu.memory_space<vmem>>, vector<1x8x8xf32>,
    %c6 = arith.constant 6 : index
    %c0_46 = arith.constant 0 : index
    %c0_47 = arith.constant 0 : index
    %43 = vector.load %arg5[%c6, %c0_46, %c0_47] : memref<8x16x8xf32, #tpu.memory_space<vmem>>, vector<1x16x8xf32>
    %44 = vector.shape_cast %43 : vector<1x16x8xf32> to vector<16x8xf32>
    %cst_48 = arith.constant dense<0.000000e+00> : vector<8x8xf32>
    %45 = tpu.matmul %6, %44, %cst_48 {dimension_numbers = #tpu.dot_dimension_numbers<[1], [0], [0], [1], [0, 0, 1, 1], [], []>} : vector<8x16xf32>, vector<16x8xf32>, vector<8x8xf32> -> vector<8x8xf32>
    %c6_49 = arith.constant 6 : index
    %c0_50 = arith.constant 0 : index
    %c0_51 = arith.constant 0 : index
    %46 = vector.load %arg4[%c6_49, %c0_50, %c0_51] : memref<8x8x8xf32, #tpu.memory_space<vmem>>, vector<1x8x8xf32>
    %47 = vector.shape_cast %46 : vector<1x8x8xf32> to vector<8x8xf32>
    %48 = vector.shape_cast %45 : vector<8x8xf32> to vector<1x8x8xf32>
    tpu.vector_store %arg4[%c6_49, %c0_50, %c0_51], %48 {strides = array<i32>} : memref<8x8x8xf32, #tpu.memory_space<vmem>>, vector<1x8x8xf32>,
    %c7 = arith.constant 7 : index
    %c0_52 = arith.constant 0 : index
    %c0_53 = arith.constant 0 : index
    %49 = vector.load %arg5[%c7, %c0_52, %c0_53] : memref<8x16x8xf32, #tpu.memory_space<vmem>>, vector<1x16x8xf32>
    %50 = vector.shape_cast %49 : vector<1x16x8xf32> to vector<16x8xf32>
    %cst_54 = arith.constant dense<0.000000e+00> : vector<8x8xf32>
    %51 = tpu.matmul %6, %50, %cst_54 {dimension_numbers = #tpu.dot_dimension_numbers<[1], [0], [0], [1], [0, 0, 1, 1], [], []>} : vector<8x16xf32>, vector<16x8xf32>, vector<8x8xf32> -> vector<8x8xf32>
    %c7_55 = arith.constant 7 : index
    %c0_56 = arith.constant 0 : index
    %c0_57 = arith.constant 0 : index
    %52 = vector.load %arg4[%c7_55, %c0_56, %c0_57] : memref<8x8x8xf32, #tpu.memory_space<vmem>>, vector<1x8x8xf32>
    %53 = vector.shape_cast %52 : vector<1x8x8xf32> to vector<8x8xf32>
    %54 = vector.shape_cast %51 : vector<8x8xf32> to vector<1x8x8xf32>
    tpu.vector_store %arg4[%c7_55, %c0_56, %c0_57], %54 {strides = array<i32>} : memref<8x8x8xf32, #tpu.memory_space<vmem>>, vector<1x8x8xf32>,
    return
  }
  func.func @transform_0(%arg0: i32) -> (i32, i32, i32) {
    %c0_i32 = arith.constant 0 : i32
    %c0_i32_0 = arith.constant 0 : i32
    %c0_i32_1 = arith.constant 0 : i32
    return %arg0, %c0_i32, %c0_i32_0 : i32, i32, i32
  }
  func.func @transform_1(%arg0: i32) -> (i32, i32) {
    %c0_i32 = arith.constant 0 : i32
    %c0_i32_0 = arith.constant 0 : i32
    %c0_i32_1 = arith.constant 0 : i32
    return %c0_i32, %c0_i32_0 : i32, i32
  }
  func.func @transform_2(%arg0: i32) -> (i32, i32) {
    %c0_i32 = arith.constant 0 : i32
    %c0_i32_0 = arith.constant 0 : i32
    %c0_i32_1 = arith.constant 0 : i32
    return %c0_i32, %c0_i32_0 : i32, i32
  }
  func.func @transform_3(%arg0: i32) -> (i32, i32, i32) {
    %c0_i32 = arith.constant 0 : i32
    %c0_i32_0 = arith.constant 0 : i32
    %c0_i32_1 = arith.constant 0 : i32
    return %arg0, %c0_i32, %c0_i32_0 : i32, i32, i32
  }
}

</mosaic_0001>

<llo_original>
// kernel: tpu_custom_call.1
$region0: #{tpu_custom_call.1}
  #allocation0 [shape = 'u32[]', space=smem, size = 0x4, offset = 0x4, fixed_abs, tag = 'smem constant byte address 0x4 - core index']
  #allocation1 [shape = 'u32[144,128]{1,0:T(1,128)}', space=vmem, size = 0x12000, scoped, tag = 'internal scratch']
  #allocation2 [shape = 'f32[8,16,8]{2,1,0:T(8,128)}', space=vmem, size = 0x10000, scoped, tag = 'scratch operand']
  %s0 = inlined_call_operand.hbm [shape: f32[8,16,16], index: 0, kind: input, shape index: {}]
  %s1 = inlined_call_operand.vmem [shape: f32[8,16], index: 1, kind: input, shape index: {}]
  %s2 = inlined_call_operand.vmem [shape: f32[16,8], index: 2, kind: input, shape index: {}]
  %s3 = inlined_call_operand.hbm [shape: f32[8,8,8], index: 3, kind: output, shape index: {}]
  %s4 = sld [smem:[#allocation0]]
  $region26: #{tpu_custom_call.1} parent=0
    _
  %s6 = ssub.s32 1, %s4
  %s7 = scalar_select 0, %s6, %s4
  $region1: #{tpu_custom_call.1} parent=0
    #allocation3 [shape = 'u8[65536]{0}', space=vmem, size = 0x10000, scoped, tag = 'input window, operand 0, single buffered']
    #allocation4 [shape = 's32[1]{0}', space=sflag, size = 0x4, scoped, tag = 'scoped memory for tpu_custom_call.1']
    #allocation5 [shape = 's32[1]{0}', space=sflag, size = 0x4, scoped, tag = 'scoped memory for tpu_custom_call.1']
    #allocation6 [shape = 'u8[32768]{0}', space=vmem, size = 0x8000, scoped, tag = 'output window, operand 0, single buffered']
    %8 = vsyncpa [#allocation4], 0
    %9 = vsyncpa [#allocation5], 0
    // Predicated region
    $region2: #{tpu_custom_call.1} parent=1 // pred_check
      _
    $region3: #{tpu_custom_call.1} parent=1 // pred_check_branch
      %11 = sbr.rel (0) target = $region5
    $region4: #{tpu_custom_call.1} parent=1 // pred_region
      %s13 = ssub.s32 2048, 2048
      %14 = vsyncadd [#allocation4], %s13
      %s15 = sshll.u32 [#allocation3], 4
      %s16 = int_to_ptr.vmem [resolvable:$true] %s15
      %21 = dma.hbm_to_vmem [thread:$0]  %s0, 2048, %s16, [#allocation4], 128, 128, 8
    $region5: #{tpu_custom_call.1} parent=1 // pred_fallthru
      _
    // Predicated region
    $region6: #{tpu_custom_call.1} parent=1 // pred_check
      _
    $region7: #{tpu_custom_call.1} parent=1 // pred_check_branch
      %23 = sbr.rel (0) target = $region9
    $region8: #{tpu_custom_call.1} parent=1 // pred_region
      _
    $region9: #{tpu_custom_call.1} parent=1 // pred_fallthru
      _
    // Predicated region
    $region10: #{tpu_custom_call.1} parent=1 // pred_check
      _
    $region11: #{tpu_custom_call.1} parent=1 // pred_check_branch
      %25 = sbr.rel (0) target = $region13
    $region12: #{tpu_custom_call.1} parent=1 // pred_region
      _
    $region13: #{tpu_custom_call.1} parent=1 // pred_fallthru
      _
    // Predicated region
    $region14: #{tpu_custom_call.1} parent=1 // pred_check
      _
    $region15: #{tpu_custom_call.1} parent=1 // pred_check_branch
      %27 = sbr.rel (0) target = $region17
    $region16: #{tpu_custom_call.1} parent=1 // pred_region
      %28 = dma.done [#allocation4], 2048
    $region17: #{tpu_custom_call.1} parent=1 // pred_fallthru
      _
    %v29 = vld [vmem:[#allocation3] sm:$0xff]
    %v30 = vld [vmem:[#allocation3 + $0x8] sm:$0xff]
    %v31 = vld [vmem:[#allocation3 + $0x10] sm:$0xff]
    %v32 = vld [vmem:[#allocation3 + $0x18] sm:$0xff]
    %v33 = vld [vmem:[#allocation3 + $0x20] sm:$0xff]
    %v34 = vld [vmem:[#allocation3 + $0x28] sm:$0xff]
    %v35 = vld [vmem:[#allocation3 + $0x30] sm:$0xff]
    %v36 = vld [vmem:[#allocation3 + $0x38] sm:$0xff]
    %v37 = vld [vmem:[#allocation3 + $0x40] sm:$0xff]
    %v38 = vld [vmem:[#allocation3 + $0x48] sm:$0xff]
    %v39 = vld [vmem:[#allocation3 + $0x50] sm:$0xff]
    %v40 = vld [vmem:[#allocation3 + $0x58] sm:$0xff]
    %v41 = vld [vmem:[#allocation3 + $0x60] sm:$0xff]
    %v42 = vld [vmem:[#allocation3 + $0x68] sm:$0xff]
    %v43 = vld [vmem:[#allocation3 + $0x70] sm:$0xff]
    %v44 = vld [vmem:[#allocation3 + $0x78] sm:$0xff]
    %v45 = vld [vmem:[%s2] sm:$0xff]
    %v46 = vld [vmem:[%s2 + $0x8] sm:$0xff]
    %vm47 = vcmask 130048
    %v49 = vsel %vm47, %v29, 0
    %v52 = vsel %vm47, %v30, 0
    %v55 = vsel %vm47, %v31, 0
    %v58 = vsel %vm47, %v32, 0
    %v61 = vsel %vm47, %v33, 0
    %v64 = vsel %vm47, %v34, 0
    %v67 = vsel %vm47, %v35, 0
    %v70 = vsel %vm47, %v36, 0
    %v73 = vsel %vm47, %v37, 0
    %v76 = vsel %vm47, %v38, 0
    %v79 = vsel %vm47, %v39, 0
    %v82 = vsel %vm47, %v40, 0
    %v85 = vsel %vm47, %v41, 0
    %v88 = vsel %vm47, %v42, 0
    %v91 = vsel %vm47, %v43, 0
    %v94 = vsel %vm47, %v44, 0
    %96 = vmatprep.subr.mxu0 0.0
    %97 = vmatpush1.msra.mxu0 0.0
    %98 = vmatprep.subr.mxu0 0.0
    %99 = vmatpush1.msra.mxu0 0.0
    %100 = vmatprep.subr.mxu0 0.0
    %101 = vmatpush1.msra.mxu0 0.0
    %102 = vmatprep.subr.mxu0 0.0
    %103 = vmatpush1.msra.mxu0 0.0
    %104 = vmatprep.subr.mxu0 0.0
    %105 = vmatpush1.msra.mxu0 0.0
    %106 = vmatprep.subr.mxu0 0.0
    %107 = vmatpush1.msra.mxu0 0.0
    %108 = vmatprep.subr.mxu0 0.0
    %109 = vmatpush1.msra.mxu0 0.0
    %110 = vmatprep.subr.mxu0 0.0
    %111 = vmatpush1.msra.mxu0 0.0
    %112 = vmatprep.subr.mxu0 0.0
    %113 = vmatpush1.msra.mxu0 0.0
    %114 = vmatprep.subr.mxu0 0.0
    %115 = vmatpush1.msra.mxu0 0.0
    %116 = vmatprep.subr.mxu0 0.0
    %117 = vmatpush1.msra.mxu0 0.0
    %118 = vmatprep.subr.mxu0 0.0
    %119 = vmatpush1.msra.mxu0 0.0
    %120 = vmatprep.subr.mxu0 0.0
    %121 = vmatpush1.msra.mxu0 0.0
    %122 = vmatprep.subr.mxu0 0.0
    %123 = vmatpush1.msra.mxu0 0.0
    %124 = vmatprep.subr.mxu0 0.0
    %125 = vmatpush1.msra.mxu0 %v46
    %126 = vmatprep.subr.mxu0 0.0
    %127 = vmatpush1.msra.mxu0 %v45
    %128 = vmatprep.subr.mxu0 0.0
    %129 = vmatpush2.msra.mxu0 0.0
    %130 = vmatprep.subr.mxu0 0.0
    %131 = vmatpush2.msra.mxu0 0.0
    %132 = vmatprep.subr.mxu0 0.0
    %133 = vmatpush2.msra.mxu0 0.0
    %134 = vmatprep.subr.mxu0 0.0
    %135 = vmatpush2.msra.mxu0 0.0
    %136 = vmatprep.subr.mxu0 0.0
    %137 = vmatpush2.msra.mxu0 0.0
    %138 = vmatprep.subr.mxu0 0.0
    %139 = vmatpush2.msra.mxu0 0.0
    %140 = vmatprep.subr.mxu0 0.0
    %141 = vmatpush2.msra.mxu0 0.0
    %142 = vmatprep.subr.mxu0 0.0
    %143 = vmatpush2.msra.mxu0 0.0
    %144 = vmatprep.subr.mxu0 0.0
    %145 = vmatpush2.msra.mxu0 0.0
    %146 = vmatprep.subr.mxu0 0.0
    %147 = vmatpush2.msra.mxu0 0.0
    %148 = vmatprep.subr.mxu0 0.0
    %149 = vmatpush2.msra.mxu0 0.0
    %150 = vmatprep.subr.mxu0 0.0
    %151 = vmatpush2.msra.mxu0 0.0
    %152 = vmatprep.subr.mxu0 0.0
    %153 = vmatpush2.msra.mxu0 0.0
    %154 = vmatprep.subr.mxu0 0.0
    %155 = vmatpush2.msra.mxu0 0.0
    %156 = vmatprep.subr.mxu0 0.0
    %157 = vmatpush2.msra.mxu0 0.0
    %158 = vmatprep.subr.mxu0 0.0
    %159 = vmatpush2.msra.mxu0 0.0
    %160 = vmatprep.mubr.f32.mxu0 0.0
    %161 = vmatmul.mubr.f32.gmra.mxu0 %v49
    %v162 = vpop.f32.mrf.mxu0
    %v163 = vadd.f32 0.0, %v162
    %v164 = vpop.f32.mrf.mxu0
    %165 = vmatprep.mubr.f32.mxu0 0.0
    %166 = vmatmul.mubr.f32.gmra.mxu0 %v52
    %v167 = vpop.f32.mrf.mxu0
    %v168 = vadd.f32 0.0, %v167
    %v169 = vpop.f32.mrf.mxu0
    %170 = vmatprep.mubr.f32.mxu0 0.0
    %171 = vmatmul.mubr.f32.gmra.mxu0 %v55
    %v172 = vpop.f32.mrf.mxu0
    %v173 = vadd.f32 0.0, %v172
    %v174 = vpop.f32.mrf.mxu0
    %175 = vmatprep.mubr.f32.mxu0 0.0
    %176 = vmatmul.mubr.f32.gmra.mxu0 %v58
    %v177 = vpop.f32.mrf.mxu0
    %v178 = vadd.f32 0.0, %v177
    %v179 = vpop.f32.mrf.mxu0
    %180 = vmatprep.mubr.f32.mxu0 0.0
    %181 = vmatmul.mubr.f32.gmra.mxu0 %v61
    %v182 = vpop.f32.mrf.mxu0
    %v183 = vadd.f32 0.0, %v182
    %v184 = vpop.f32.mrf.mxu0
    %185 = vmatprep.mubr.f32.mxu0 0.0
    %186 = vmatmul.mubr.f32.gmra.mxu0 %v64
    %v187 = vpop.f32.mrf.mxu0
    %v188 = vadd.f32 0.0, %v187
    %v189 = vpop.f32.mrf.mxu0
    %190 = vmatprep.mubr.f32.mxu0 0.0
    %191 = vmatmul.mubr.f32.gmra.mxu0 %v67
    %v192 = vpop.f32.mrf.mxu0
    %v193 = vadd.f32 0.0, %v192
    %v194 = vpop.f32.mrf.mxu0
    %195 = vmatprep.mubr.f32.mxu0 0.0
    %196 = vmatmul.mubr.f32.gmra.mxu0 %v70
    %v197 = vpop.f32.mrf.mxu0
    %v198 = vadd.f32 0.0, %v197
    %v199 = vpop.f32.mrf.mxu0
    %200 = vmatprep.mubr.f32.mxu0 0.0
    %201 = vmatmul.mubr.f32.gmra.mxu0 %v73
    %v202 = vpop.f32.mrf.mxu0
    %v203 = vadd.f32 0.0, %v202
    %v204 = vpop.f32.mrf.mxu0
    %205 = vmatprep.mubr.f32.mxu0 0.0
    %206 = vmatmul.mubr.f32.gmra.mxu0 %v76
    %v207 = vpop.f32.mrf.mxu0
    %v208 = vadd.f32 0.0, %v207
    %v209 = vpop.f32.mrf.mxu0
    %210 = vmatprep.mubr.f32.mxu0 0.0
    %211 = vmatmul.mubr.f32.gmra.mxu0 %v79
    %v212 = vpop.f32.mrf.mxu0
    %v213 = vadd.f32 0.0, %v212
    %v214 = vpop.f32.mrf.mxu0
    %215 = vmatprep.mubr.f32.mxu0 0.0
    %216 = vmatmul.mubr.f32.gmra.mxu0 %v82
    %v217 = vpop.f32.mrf.mxu0
    %v218 = vadd.f32 0.0, %v217
    %v219 = vpop.f32.mrf.mxu0
    %220 = vmatprep.mubr.f32.mxu0 0.0
    %221 = vmatmul.mubr.f32.gmra.mxu0 %v85
    %v222 = vpop.f32.mrf.mxu0
    %v223 = vadd.f32 0.0, %v222
    %v224 = vpop.f32.mrf.mxu0
    %225 = vmatprep.mubr.f32.mxu0 0.0
    %226 = vmatmul.mubr.f32.gmra.mxu0 %v88
    %v227 = vpop.f32.mrf.mxu0
    %v228 = vadd.f32 0.0, %v227
    %v229 = vpop.f32.mrf.mxu0
    %230 = vmatprep.mubr.f32.mxu0 0.0
    %231 = vmatmul.mubr.f32.gmra.mxu0 %v91
    %v232 = vpop.f32.mrf.mxu0
    %v233 = vadd.f32 0.0, %v232
    %v234 = vpop.f32.mrf.mxu0
    %235 = vmatprep.mubr.f32.mxu0 0.0
    %236 = vmatmul.mubr.f32.gmra.mxu0 %v94
    %v237 = vpop.f32.mrf.mxu0
    %v238 = vadd.f32 0.0, %v237
    %v239 = vpop.f32.mrf.mxu0
    %240 = vdwg.mxu0
    %vm241 = vcmask 64512
    %242 = vst.msk [vmem:[#allocation2] sm:$0xff] %vm241, %v163
    %243 = vst.msk [vmem:[#allocation2 + $0x8] sm:$0xff] %vm241, %v168
    %244 = vst.msk [vmem:[#allocation2 + $0x10] sm:$0xff] %vm241, %v173
    %245 = vst.msk [vmem:[#allocation2 + $0x18] sm:$0xff] %vm241, %v178
    %246 = vst.msk [vmem:[#allocation2 + $0x20] sm:$0xff] %vm241, %v183
    %247 = vst.msk [vmem:[#allocation2 + $0x28] sm:$0xff] %vm241, %v188
    %248 = vst.msk [vmem:[#allocation2 + $0x30] sm:$0xff] %vm241, %v193
    %249 = vst.msk [vmem:[#allocation2 + $0x38] sm:$0xff] %vm241, %v198
    %250 = vst.msk [vmem:[#allocation2 + $0x40] sm:$0xff] %vm241, %v203
    %251 = vst.msk [vmem:[#allocation2 + $0x48] sm:$0xff] %vm241, %v208
    %252 = vst.msk [vmem:[#allocation2 + $0x50] sm:$0xff] %vm241, %v213
    %253 = vst.msk [vmem:[#allocation2 + $0x58] sm:$0xff] %vm241, %v218
    %254 = vst.msk [vmem:[#allocation2 + $0x60] sm:$0xff] %vm241, %v223
    %255 = vst.msk [vmem:[#allocation2 + $0x68] sm:$0xff] %vm241, %v228
    %256 = vst.msk [vmem:[#allocation2 + $0x70] sm:$0xff] %vm241, %v233
    %257 = vst.msk [vmem:[#allocation2 + $0x78] sm:$0xff] %vm241, %v238
    %v258 = vld [vmem:[%s1] sm:$0xff]
    %v259 = vld [vmem:[#allocation2] sm:$0xff]
    %v260 = vld [vmem:[#allocation2 + $0x8] sm:$0xff]
    %v262 = vsel %vm47, %v258, 0
    %264 = vmatprep.subr.mxu0 0.0
    %265 = vmatpush1.msra.mxu0 0.0
    %266 = vmatprep.subr.mxu0 0.0
    %267 = vmatpush1.msra.mxu0 0.0
    %268 = vmatprep.subr.mxu0 0.0
    %269 = vmatpush1.msra.mxu0 0.0
    %270 = vmatprep.subr.mxu0 0.0
    %271 = vmatpush1.msra.mxu0 0.0
    %272 = vmatprep.subr.mxu0 0.0
    %273 = vmatpush1.msra.mxu0 0.0
    %274 = vmatprep.subr.mxu0 0.0
    %275 = vmatpush1.msra.mxu0 0.0
    %276 = vmatprep.subr.mxu0 0.0
    %277 = vmatpush1.msra.mxu0 0.0
    %278 = vmatprep.subr.mxu0 0.0
    %279 = vmatpush1.msra.mxu0 0.0
    %280 = vmatprep.subr.mxu0 0.0
    %281 = vmatpush1.msra.mxu0 0.0
    %282 = vmatprep.subr.mxu0 0.0
    %283 = vmatpush1.msra.mxu0 0.0
    %284 = vmatprep.subr.mxu0 0.0
    %285 = vmatpush1.msra.mxu0 0.0
    %286 = vmatprep.subr.mxu0 0.0
    %287 = vmatpush1.msra.mxu0 0.0
    %288 = vmatprep.subr.mxu0 0.0
    %289 = vmatpush1.msra.mxu0 0.0
    %290 = vmatprep.subr.mxu0 0.0
    %291 = vmatpush1.msra.mxu0 0.0
    %292 = vmatprep.subr.mxu0 0.0
    %293 = vmatpush1.msra.mxu0 %v260
    %294 = vmatprep.subr.mxu0 0.0
    %295 = vmatpush1.msra.mxu0 %v259
    %296 = vmatprep.subr.mxu0 0.0
    %297 = vmatpush2.msra.mxu0 0.0
    %298 = vmatprep.subr.mxu0 0.0
    %299 = vmatpush2.msra.mxu0 0.0
    %300 = vmatprep.subr.mxu0 0.0
    %301 = vmatpush2.msra.mxu0 0.0
    %302 = vmatprep.subr.mxu0 0.0
    %303 = vmatpush2.msra.mxu0 0.0
    %304 = vmatprep.subr.mxu0 0.0
    %305 = vmatpush2.msra.mxu0 0.0
    %306 = vmatprep.subr.mxu0 0.0
    %307 = vmatpush2.msra.mxu0 0.0
    %308 = vmatprep.subr.mxu0 0.0
    %309 = vmatpush2.msra.mxu0 0.0
    %310 = vmatprep.subr.mxu0 0.0
    %311 = vmatpush2.msra.mxu0 0.0
    %312 = vmatprep.subr.mxu0 0.0
    %313 = vmatpush2.msra.mxu0 0.0
    %314 = vmatprep.subr.mxu0 0.0
    %315 = vmatpush2.msra.mxu0 0.0
    %316 = vmatprep.subr.mxu0 0.0
    %317 = vmatpush2.msra.mxu0 0.0
    %318 = vmatprep.subr.mxu0 0.0
    %319 = vmatpush2.msra.mxu0 0.0
    %320 = vmatprep.subr.mxu0 0.0
    %321 = vmatpush2.msra.mxu0 0.0
    %322 = vmatprep.subr.mxu0 0.0
    %323 = vmatpush2.msra.mxu0 0.0
    %324 = vmatprep.subr.mxu0 0.0
    %325 = vmatpush2.msra.mxu0 0.0
    %326 = vmatprep.subr.mxu0 0.0
    %327 = vmatpush2.msra.mxu0 0.0
    %328 = vmatprep.mubr.f32.mxu0 0.0
    %329 = vmatmul.mubr.f32.gmra.mxu0 %v262
    %v330 = vpop.f32.mrf.mxu0
    %v331 = vadd.f32 0.0, %v330
    %v332 = vpop.f32.mrf.mxu0
    %333 = vdwg.mxu0
    %334 = vst.msk [vmem:[#allocation6] sm:$0xff] %vm241, %v331
    %s335 = scalar_lea.vmem [#allocation2], 16
    %v336 = vld [vmem:[%s335] sm:$0xff]
    %v337 = vld [vmem:[%s335 + $0x8] sm:$0xff]
    %338 = vmatprep.subr.mxu0 0.0
    %339 = vmatpush1.msra.mxu0 0.0
    %340 = vmatprep.subr.mxu0 0.0
    %341 = vmatpush1.msra.mxu0 0.0
    %342 = vmatprep.subr.mxu0 0.0
    %343 = vmatpush1.msra.mxu0 0.0
    %344 = vmatprep.subr.mxu0 0.0
    %345 = vmatpush1.msra.mxu0 0.0
    %346 = vmatprep.subr.mxu0 0.0
    %347 = vmatpush1.msra.mxu0 0.0
    %348 = vmatprep.subr.mxu0 0.0
    %349 = vmatpush1.msra.mxu0 0.0
    %350 = vmatprep.subr.mxu0 0.0
    %351 = vmatpush1.msra.mxu0 0.0
    %352 = vmatprep.subr.mxu0 0.0
    %353 = vmatpush1.msra.mxu0 0.0
    %354 = vmatprep.subr.mxu0 0.0
    %355 = vmatpush1.msra.mxu0 0.0
    %356 = vmatprep.subr.mxu0 0.0
    %357 = vmatpush1.msra.mxu0 0.0
    %358 = vmatprep.subr.mxu0 0.0
    %359 = vmatpush1.msra.mxu0 0.0
    %360 = vmatprep.subr.mxu0 0.0
    %361 = vmatpush1.msra.mxu0 0.0
    %362 = vmatprep.subr.mxu0 0.0
    %363 = vmatpush1.msra.mxu0 0.0
    %364 = vmatprep.subr.mxu0 0.0
    %365 = vmatpush1.msra.mxu0 0.0
    %366 = vmatprep.subr.mxu0 0.0
    %367 = vmatpush1.msra.mxu0 %v337
    %368 = vmatprep.subr.mxu0 0.0
    %369 = vmatpush1.msra.mxu0 %v336
    %370 = vmatprep.subr.mxu0 0.0
    %371 = vmatpush2.msra.mxu0 0.0
    %372 = vmatprep.subr.mxu0 0.0
    %373 = vmatpush2.msra.mxu0 0.0
    %374 = vmatprep.subr.mxu0 0.0
    %375 = vmatpush2.msra.mxu0 0.0
    %376 = vmatprep.subr.mxu0 0.0
    %377 = vmatpush2.msra.mxu0 0.0
    %378 = vmatprep.subr.mxu0 0.0
    %379 = vmatpush2.msra.mxu0 0.0
    %380 = vmatprep.subr.mxu0 0.0
    %381 = vmatpush2.msra.mxu0 0.0
    %382 = vmatprep.subr.mxu0 0.0
    %383 = vmatpush2.msra.mxu0 0.0
    %384 = vmatprep.subr.mxu0 0.0
    %385 = vmatpush2.msra.mxu0 0.0
    %386 = vmatprep.subr.mxu0 0.0
    %387 = vmatpush2.msra.mxu0 0.0
    %388 = vmatprep.subr.mxu0 0.0
    %389 = vmatpush2.msra.mxu0 0.0
    %390 = vmatprep.subr.mxu0 0.0
    %391 = vmatpush2.msra.mxu0 0.0
    %392 = vmatprep.subr.mxu0 0.0
    %393 = vmatpush2.msra.mxu0 0.0
    %394 = vmatprep.subr.mxu0 0.0
    %395 = vmatpush2.msra.mxu0 0.0
    %396 = vmatprep.subr.mxu0 0.0
    %397 = vmatpush2.msra.mxu0 0.0
    %398 = vmatprep.subr.mxu0 0.0
    %399 = vmatpush2.msra.mxu0 0.0
    %400 = vmatprep.subr.mxu0 0.0
    %401 = vmatpush2.msra.mxu0 0.0
    %402 = vmatprep.mubr.f32.mxu0 0.0
    %403 = vmatmul.mubr.f32.gmra.mxu0 %v262
    %v404 = vpop.f32.mrf.mxu0
    %v405 = vadd.f32 0.0, %v404
    %v406 = vpop.f32.mrf.mxu0
    %407 = vdwg.mxu0
    %s408 = scalar_lea.vmem [#allocation6], 8
    %409 = vst.msk [vmem:[%s408] sm:$0xff] %vm241, %v405
    %s410 = scalar_lea.vmem [#allocation2], 32
    %v411 = vld [vmem:[%s410] sm:$0xff]
    %v412 = vld [vmem:[%s410 + $0x8] sm:$0xff]
    %413 = vmatprep.subr.mxu0 0.0
    %414 = vmatpush1.msra.mxu0 0.0
    %415 = vmatprep.subr.mxu0 0.0
    %416 = vmatpush1.msra.mxu0 0.0
    %417 = vmatprep.subr.mxu0 0.0
    %418 = vmatpush1.msra.mxu0 0.0
    %419 = vmatprep.subr.mxu0 0.0
    %420 = vmatpush1.msra.mxu0 0.0
    %421 = vmatprep.subr.mxu0 0.0
    %422 = vmatpush1.msra.mxu0 0.0
    %423 = vmatprep.subr.mxu0 0.0
    %424 = vmatpush1.msra.mxu0 0.0
    %425 = vmatprep.subr.mxu0 0.0
    %426 = vmatpush1.msra.mxu0 0.0
    %427 = vmatprep.subr.mxu0 0.0
    %428 = vmatpush1.msra.mxu0 0.0
    %429 = vmatprep.subr.mxu0 0.0
    %430 = vmatpush1.msra.mxu0 0.0
    %431 = vmatprep.subr.mxu0 0.0
    %432 = vmatpush1.msra.mxu0 0.0
    %433 = vmatprep.subr.mxu0 0.0
    %434 = vmatpush1.msra.mxu0 0.0
    %435 = vmatprep.subr.mxu0 0.0
    %436 = vmatpush1.msra.mxu0 0.0
    %437 = vmatprep.subr.mxu0 0.0
    %438 = vmatpush1.msra.mxu0 0.0
    %439 = vmatprep.subr.mxu0 0.0
    %440 = vmatpush1.msra.mxu0 0.0
    %441 = vmatprep.subr.mxu0 0.0
    %442 = vmatpush1.msra.mxu0 %v412
    %443 = vmatprep.subr.mxu0 0.0
    %444 = vmatpush1.msra.mxu0 %v411
    %445 = vmatprep.subr.mxu0 0.0
    %446 = vmatpush2.msra.mxu0 0.0
    %447 = vmatprep.subr.mxu0 0.0
    %448 = vmatpush2.msra.mxu0 0.0
    %449 = vmatprep.subr.mxu0 0.0
    %450 = vmatpush2.msra.mxu0 0.0
    %451 = vmatprep.subr.mxu0 0.0
    %452 = vmatpush2.msra.mxu0 0.0
    %453 = vmatprep.subr.mxu0 0.0
    %454 = vmatpush2.msra.mxu0 0.0
    %455 = vmatprep.subr.mxu0 0.0
    %456 = vmatpush2.msra.mxu0 0.0
    %457 = vmatprep.subr.mxu0 0.0
    %458 = vmatpush2.msra.mxu0 0.0
    %459 = vmatprep.subr.mxu0 0.0
    %460 = vmatpush2.msra.mxu0 0.0
    %461 = vmatprep.subr.mxu0 0.0
    %462 = vmatpush2.msra.mxu0 0.0
    %463 = vmatprep.subr.mxu0 0.0
    %464 = vmatpush2.msra.mxu0 0.0
    %465 = vmatprep.subr.mxu0 0.0
    %466 = vmatpush2.msra.mxu0 0.0
    %467 = vmatprep.subr.mxu0 0.0
    %468 = vmatpush2.msra.mxu0 0.0
    %469 = vmatprep.subr.mxu0 0.0
    %470 = vmatpush2.msra.mxu0 0.0
    %471 = vmatprep.subr.mxu0 0.0
    %472 = vmatpush2.msra.mxu0 0.0
    %473 = vmatprep.subr.mxu0 0.0
    %474 = vmatpush2.msra.mxu0 0.0
    %475 = vmatprep.subr.mxu0 0.0
    %476 = vmatpush2.msra.mxu0 0.0
    %477 = vmatprep.mubr.f32.mxu0 0.0
    %478 = vmatmul.mubr.f32.gmra.mxu0 %v262
    %v479 = vpop.f32.mrf.mxu0
    %v480 = vadd.f32 0.0, %v479
    %v481 = vpop.f32.mrf.mxu0
    %482 = vdwg.mxu0
    %s483 = scalar_lea.vmem [#allocation6], 16
    %484 = vst.msk [vmem:[%s483] sm:$0xff] %vm241, %v480
    %s485 = scalar_lea.vmem [#allocation2], 48
    %v486 = vld [vmem:[%s485] sm:$0xff]
    %v487 = vld [vmem:[%s485 + $0x8] sm:$0xff]
    %488 = vmatprep.subr.mxu0 0.0
    %489 = vmatpush1.msra.mxu0 0.0
    %490 = vmatprep.subr.mxu0 0.0
    %491 = vmatpush1.msra.mxu0 0.0
    %492 = vmatprep.subr.mxu0 0.0
    %493 = vmatpush1.msra.mxu0 0.0
    %494 = vmatprep.subr.mxu0 0.0
    %495 = vmatpush1.msra.mxu0 0.0
    %496 = vmatprep.subr.mxu0 0.0
    %497 = vmatpush1.msra.mxu0 0.0
    %498 = vmatprep.subr.mxu0 0.0
    %499 = vmatpush1.msra.mxu0 0.0
    %500 = vmatprep.subr.mxu0 0.0
    %501 = vmatpush1.msra.mxu0 0.0
    %502 = vmatprep.subr.mxu0 0.0
    %503 = vmatpush1.msra.mxu0 0.0
    %504 = vmatprep.subr.mxu0 0.0
    %505 = vmatpush1.msra.mxu0 0.0
    %506 = vmatprep.subr.mxu0 0.0
    %507 = vmatpush1.msra.mxu0 0.0
    %508 = vmatprep.subr.mxu0 0.0
    %509 = vmatpush1.msra.mxu0 0.0
    %510 = vmatprep.subr.mxu0 0.0
    %511 = vmatpush1.msra.mxu0 0.0
    %512 = vmatprep.subr.mxu0 0.0
    %513 = vmatpush1.msra.mxu0 0.0
    %514 = vmatprep.subr.mxu0 0.0
    %515 = vmatpush1.msra.mxu0 0.0
    %516 = vmatprep.subr.mxu0 0.0
    %517 = vmatpush1.msra.mxu0 %v487
    %518 = vmatprep.subr.mxu0 0.0
    %519 = vmatpush1.msra.mxu0 %v486
    %520 = vmatprep.subr.mxu0 0.0
    %521 = vmatpush2.msra.mxu0 0.0
    %522 = vmatprep.subr.mxu0 0.0
    %523 = vmatpush2.msra.mxu0 0.0
    %524 = vmatprep.subr.mxu0 0.0
    %525 = vmatpush2.msra.mxu0 0.0
    %526 = vmatprep.subr.mxu0 0.0
    %527 = vmatpush2.msra.mxu0 0.0
    %528 = vmatprep.subr.mxu0 0.0
    %529 = vmatpush2.msra.mxu0 0.0
    %530 = vmatprep.subr.mxu0 0.0
    %531 = vmatpush2.msra.mxu0 0.0
    %532 = vmatprep.subr.mxu0 0.0
    %533 = vmatpush2.msra.mxu0 0.0
    %534 = vmatprep.subr.mxu0 0.0
    %535 = vmatpush2.msra.mxu0 0.0
    %536 = vmatprep.subr.mxu0 0.0
    %537 = vmatpush2.msra.mxu0 0.0
    %538 = vmatprep.subr.mxu0 0.0
    %539 = vmatpush2.msra.mxu0 0.0
    %540 = vmatprep.subr.mxu0 0.0
    %541 = vmatpush2.msra.mxu0 0.0
    %542 = vmatprep.subr.mxu0 0.0
    %543 = vmatpush2.msra.mxu0 0.0
    %544 = vmatprep.subr.mxu0 0.0
    %545 = vmatpush2.msra.mxu0 0.0
    %546 = vmatprep.subr.mxu0 0.0
    %547 = vmatpush2.msra.mxu0 0.0
    %548 = vmatprep.subr.mxu0 0.0
    %549 = vmatpush2.msra.mxu0 0.0
    %550 = vmatprep.subr.mxu0 0.0
    %551 = vmatpush2.msra.mxu0 0.0
    %552 = vmatprep.mubr.f32.mxu0 0.0
    %553 = vmatmul.mubr.f32.gmra.mxu0 %v262
    %v554 = vpop.f32.mrf.mxu0
    %v555 = vadd.f32 0.0, %v554
    %v556 = vpop.f32.mrf.mxu0
    %557 = vdwg.mxu0
    %s558 = scalar_lea.vmem [#allocation6], 24
    %559 = vst.msk [vmem:[%s558] sm:$0xff] %vm241, %v555
    %s560 = scalar_lea.vmem [#allocation2], 64
    %v561 = vld [vmem:[%s560] sm:$0xff]
    %v562 = vld [vmem:[%s560 + $0x8] sm:$0xff]
    %563 = vmatprep.subr.mxu0 0.0
    %564 = vmatpush1.msra.mxu0 0.0
    %565 = vmatprep.subr.mxu0 0.0
    %566 = vmatpush1.msra.mxu0 0.0
    %567 = vmatprep.subr.mxu0 0.0
    %568 = vmatpush1.msra.mxu0 0.0
    %569 = vmatprep.subr.mxu0 0.0
    %570 = vmatpush1.msra.mxu0 0.0
    %571 = vmatprep.subr.mxu0 0.0
    %572 = vmatpush1.msra.mxu0 0.0
    %573 = vmatprep.subr.mxu0 0.0
    %574 = vmatpush1.msra.mxu0 0.0
    %575 = vmatprep.subr.mxu0 0.0
    %576 = vmatpush1.msra.mxu0 0.0
    %577 = vmatprep.subr.mxu0 0.0
    %578 = vmatpush1.msra.mxu0 0.0
    %579 = vmatprep.subr.mxu0 0.0
    %580 = vmatpush1.msra.mxu0 0.0
    %581 = vmatprep.subr.mxu0 0.0
    %582 = vmatpush1.msra.mxu0 0.0
    %583 = vmatprep.subr.mxu0 0.0
    %584 = vmatpush1.msra.mxu0 0.0
    %585 = vmatprep.subr.mxu0 0.0
    %586 = vmatpush1.msra.mxu0 0.0
    %587 = vmatprep.subr.mxu0 0.0
    %588 = vmatpush1.msra.mxu0 0.0
    %589 = vmatprep.subr.mxu0 0.0
    %590 = vmatpush1.msra.mxu0 0.0
    %591 = vmatprep.subr.mxu0 0.0
    %592 = vmatpush1.msra.mxu0 %v562
    %593 = vmatprep.subr.mxu0 0.0
    %594 = vmatpush1.msra.mxu0 %v561
    %595 = vmatprep.subr.mxu0 0.0
    %596 = vmatpush2.msra.mxu0 0.0
    %597 = vmatprep.subr.mxu0 0.0
    %598 = vmatpush2.msra.mxu0 0.0
    %599 = vmatprep.subr.mxu0 0.0
    %600 = vmatpush2.msra.mxu0 0.0
    %601 = vmatprep.subr.mxu0 0.0
    %602 = vmatpush2.msra.mxu0 0.0
    %603 = vmatprep.subr.mxu0 0.0
    %604 = vmatpush2.msra.mxu0 0.0
    %605 = vmatprep.subr.mxu0 0.0
    %606 = vmatpush2.msra.mxu0 0.0
    %607 = vmatprep.subr.mxu0 0.0
    %608 = vmatpush2.msra.mxu0 0.0
    %609 = vmatprep.subr.mxu0 0.0
    %610 = vmatpush2.msra.mxu0 0.0
    %611 = vmatprep.subr.mxu0 0.0
    %612 = vmatpush2.msra.mxu0 0.0
    %613 = vmatprep.subr.mxu0 0.0
    %614 = vmatpush2.msra.mxu0 0.0
    %615 = vmatprep.subr.mxu0 0.0
    %616 = vmatpush2.msra.mxu0 0.0
    %617 = vmatprep.subr.mxu0 0.0
    %618 = vmatpush2.msra.mxu0 0.0
    %619 = vmatprep.subr.mxu0 0.0
    %620 = vmatpush2.msra.mxu0 0.0
    %621 = vmatprep.subr.mxu0 0.0
    %622 = vmatpush2.msra.mxu0 0.0
    %623 = vmatprep.subr.mxu0 0.0
    %624 = vmatpush2.msra.mxu0 0.0
    %625 = vmatprep.subr.mxu0 0.0
    %626 = vmatpush2.msra.mxu0 0.0
    %627 = vmatprep.mubr.f32.mxu0 0.0
    %628 = vmatmul.mubr.f32.gmra.mxu0 %v262
    %v629 = vpop.f32.mrf.mxu0
    %v630 = vadd.f32 0.0, %v629
    %v631 = vpop.f32.mrf.mxu0
    %632 = vdwg.mxu0
    %s633 = scalar_lea.vmem [#allocation6], 32
    %634 = vst.msk [vmem:[%s633] sm:$0xff] %vm241, %v630
    %s635 = scalar_lea.vmem [#allocation2], 80
    %v636 = vld [vmem:[%s635] sm:$0xff]
    %v637 = vld [vmem:[%s635 + $0x8] sm:$0xff]
    %638 = vmatprep.subr.mxu0 0.0
    %639 = vmatpush1.msra.mxu0 0.0
    %640 = vmatprep.subr.mxu0 0.0
    %641 = vmatpush1.msra.mxu0 0.0
    %642 = vmatprep.subr.mxu0 0.0
    %643 = vmatpush1.msra.mxu0 0.0
    %644 = vmatprep.subr.mxu0 0.0
    %645 = vmatpush1.msra.mxu0 0.0
    %646 = vmatprep.subr.mxu0 0.0
    %647 = vmatpush1.msra.mxu0 0.0
    %648 = vmatprep.subr.mxu0 0.0
    %649 = vmatpush1.msra.mxu0 0.0
    %650 = vmatprep.subr.mxu0 0.0
    %651 = vmatpush1.msra.mxu0 0.0
    %652 = vmatprep.subr.mxu0 0.0
    %653 = vmatpush1.msra.mxu0 0.0
    %654 = vmatprep.subr.mxu0 0.0
    %655 = vmatpush1.msra.mxu0 0.0
    %656 = vmatprep.subr.mxu0 0.0
    %657 = vmatpush1.msra.mxu0 0.0
    %658 = vmatprep.subr.mxu0 0.0
    %659 = vmatpush1.msra.mxu0 0.0
    %660 = vmatprep.subr.mxu0 0.0
    %661 = vmatpush1.msra.mxu0 0.0
    %662 = vmatprep.subr.mxu0 0.0
    %663 = vmatpush1.msra.mxu0 0.0
    %664 = vmatprep.subr.mxu0 0.0
    %665 = vmatpush1.msra.mxu0 0.0
    %666 = vmatprep.subr.mxu0 0.0
    %667 = vmatpush1.msra.mxu0 %v637
    %668 = vmatprep.subr.mxu0 0.0
    %669 = vmatpush1.msra.mxu0 %v636
    %670 = vmatprep.subr.mxu0 0.0
    %671 = vmatpush2.msra.mxu0 0.0
    %672 = vmatprep.subr.mxu0 0.0
    %673 = vmatpush2.msra.mxu0 0.0
    %674 = vmatprep.subr.mxu0 0.0
    %675 = vmatpush2.msra.mxu0 0.0
    %676 = vmatprep.subr.mxu0 0.0
    %677 = vmatpush2.msra.mxu0 0.0
    %678 = vmatprep.subr.mxu0 0.0
    %679 = vmatpush2.msra.mxu0 0.0
    %680 = vmatprep.subr.mxu0 0.0
    %681 = vmatpush2.msra.mxu0 0.0
    %682 = vmatprep.subr.mxu0 0.0
    %683 = vmatpush2.msra.mxu0 0.0
    %684 = vmatprep.subr.mxu0 0.0
    %685 = vmatpush2.msra.mxu0 0.0
    %686 = vmatprep.subr.mxu0 0.0
    %687 = vmatpush2.msra.mxu0 0.0
    %688 = vmatprep.subr.mxu0 0.0
    %689 = vmatpush2.msra.mxu0 0.0
    %690 = vmatprep.subr.mxu0 0.0
    %691 = vmatpush2.msra.mxu0 0.0
    %692 = vmatprep.subr.mxu0 0.0
    %693 = vmatpush2.msra.mxu0 0.0
    %694 = vmatprep.subr.mxu0 0.0
    %695 = vmatpush2.msra.mxu0 0.0
    %696 = vmatprep.subr.mxu0 0.0
    %697 = vmatpush2.msra.mxu0 0.0
    %698 = vmatprep.subr.mxu0 0.0
    %699 = vmatpush2.msra.mxu0 0.0
    %700 = vmatprep.subr.mxu0 0.0
    %701 = vmatpush2.msra.mxu0 0.0
    %702 = vmatprep.mubr.f32.mxu0 0.0
    %703 = vmatmul.mubr.f32.gmra.mxu0 %v262
    %v704 = vpop.f32.mrf.mxu0
    %v705 = vadd.f32 0.0, %v704
    %v706 = vpop.f32.mrf.mxu0
    %707 = vdwg.mxu0
    %s708 = scalar_lea.vmem [#allocation6], 40
    %709 = vst.msk [vmem:[%s708] sm:$0xff] %vm241, %v705
    %s710 = scalar_lea.vmem [#allocation2], 96
    %v711 = vld [vmem:[%s710] sm:$0xff]
    %v712 = vld [vmem:[%s710 + $0x8] sm:$0xff]
    %713 = vmatprep.subr.mxu0 0.0
    %714 = vmatpush1.msra.mxu0 0.0
    %715 = vmatprep.subr.mxu0 0.0
    %716 = vmatpush1.msra.mxu0 0.0
    %717 = vmatprep.subr.mxu0 0.0
    %718 = vmatpush1.msra.mxu0 0.0
    %719 = vmatprep.subr.mxu0 0.0
    %720 = vmatpush1.msra.mxu0 0.0
    %721 = vmatprep.subr.mxu0 0.0
    %722 = vmatpush1.msra.mxu0 0.0
    %723 = vmatprep.subr.mxu0 0.0
    %724 = vmatpush1.msra.mxu0 0.0
    %725 = vmatprep.subr.mxu0 0.0
    %726 = vmatpush1.msra.mxu0 0.0
    %727 = vmatprep.subr.mxu0 0.0
    %728 = vmatpush1.msra.mxu0 0.0
    %729 = vmatprep.subr.mxu0 0.0
    %730 = vmatpush1.msra.mxu0 0.0
    %731 = vmatprep.subr.mxu0 0.0
    %732 = vmatpush1.msra.mxu0 0.0
    %733 = vmatprep.subr.mxu0 0.0
    %734 = vmatpush1.msra.mxu0 0.0
    %735 = vmatprep.subr.mxu0 0.0
    %736 = vmatpush1.msra.mxu0 0.0
    %737 = vmatprep.subr.mxu0 0.0
    %738 = vmatpush1.msra.mxu0 0.0
    %739 = vmatprep.subr.mxu0 0.0
    %740 = vmatpush1.msra.mxu0 0.0
    %741 = vmatprep.subr.mxu0 0.0
    %742 = vmatpush1.msra.mxu0 %v712
    %743 = vmatprep.subr.mxu0 0.0
    %744 = vmatpush1.msra.mxu0 %v711
    %745 = vmatprep.subr.mxu0 0.0
    %746 = vmatpush2.msra.mxu0 0.0
    %747 = vmatprep.subr.mxu0 0.0
    %748 = vmatpush2.msra.mxu0 0.0
    %749 = vmatprep.subr.mxu0 0.0
    %750 = vmatpush2.msra.mxu0 0.0
    %751 = vmatprep.subr.mxu0 0.0
    %752 = vmatpush2.msra.mxu0 0.0
    %753 = vmatprep.subr.mxu0 0.0
    %754 = vmatpush2.msra.mxu0 0.0
    %755 = vmatprep.subr.mxu0 0.0
    %756 = vmatpush2.msra.mxu0 0.0
    %757 = vmatprep.subr.mxu0 0.0
    %758 = vmatpush2.msra.mxu0 0.0
    %759 = vmatprep.subr.mxu0 0.0
    %760 = vmatpush2.msra.mxu0 0.0
    %761 = vmatprep.subr.mxu0 0.0
    %762 = vmatpush2.msra.mxu0 0.0
    %763 = vmatprep.subr.mxu0 0.0
    %764 = vmatpush2.msra.mxu0 0.0
    %765 = vmatprep.subr.mxu0 0.0
    %766 = vmatpush2.msra.mxu0 0.0
    %767 = vmatprep.subr.mxu0 0.0
    %768 = vmatpush2.msra.mxu0 0.0
    %769 = vmatprep.subr.mxu0 0.0
    %770 = vmatpush2.msra.mxu0 0.0
    %771 = vmatprep.subr.mxu0 0.0
    %772 = vmatpush2.msra.mxu0 0.0
    %773 = vmatprep.subr.mxu0 0.0
    %774 = vmatpush2.msra.mxu0 0.0
    %775 = vmatprep.subr.mxu0 0.0
    %776 = vmatpush2.msra.mxu0 0.0
    %777 = vmatprep.mubr.f32.mxu0 0.0
    %778 = vmatmul.mubr.f32.gmra.mxu0 %v262
    %v779 = vpop.f32.mrf.mxu0
    %v780 = vadd.f32 0.0, %v779
    %v781 = vpop.f32.mrf.mxu0
    %782 = vdwg.mxu0
    %s783 = scalar_lea.vmem [#allocation6], 48
    %784 = vst.msk [vmem:[%s783] sm:$0xff] %vm241, %v780
    %s785 = scalar_lea.vmem [#allocation2], 112
    %v786 = vld [vmem:[%s785] sm:$0xff]
    %v787 = vld [vmem:[%s785 + $0x8] sm:$0xff]
    %788 = vmatprep.subr.mxu0 0.0
    %789 = vmatpush1.msra.mxu0 0.0
    %790 = vmatprep.subr.mxu0 0.0
    %791 = vmatpush1.msra.mxu0 0.0
    %792 = vmatprep.subr.mxu0 0.0
    %793 = vmatpush1.msra.mxu0 0.0
    %794 = vmatprep.subr.mxu0 0.0
    %795 = vmatpush1.msra.mxu0 0.0
    %796 = vmatprep.subr.mxu0 0.0
    %797 = vmatpush1.msra.mxu0 0.0
    %798 = vmatprep.subr.mxu0 0.0
    %799 = vmatpush1.msra.mxu0 0.0
    %800 = vmatprep.subr.mxu0 0.0
    %801 = vmatpush1.msra.mxu0 0.0
    %802 = vmatprep.subr.mxu0 0.0
    %803 = vmatpush1.msra.mxu0 0.0
    %804 = vmatprep.subr.mxu0 0.0
    %805 = vmatpush1.msra.mxu0 0.0
    %806 = vmatprep.subr.mxu0 0.0
    %807 = vmatpush1.msra.mxu0 0.0
    %808 = vmatprep.subr.mxu0 0.0
    %809 = vmatpush1.msra.mxu0 0.0
    %810 = vmatprep.subr.mxu0 0.0
    %811 = vmatpush1.msra.mxu0 0.0
    %812 = vmatprep.subr.mxu0 0.0
    %813 = vmatpush1.msra.mxu0 0.0
    %814 = vmatprep.subr.mxu0 0.0
    %815 = vmatpush1.msra.mxu0 0.0
    %816 = vmatprep.subr.mxu0 0.0
    %817 = vmatpush1.msra.mxu0 %v787
    %818 = vmatprep.subr.mxu0 0.0
    %819 = vmatpush1.msra.mxu0 %v786
    %820 = vmatprep.subr.mxu0 0.0
    %821 = vmatpush2.msra.mxu0 0.0
    %822 = vmatprep.subr.mxu0 0.0
    %823 = vmatpush2.msra.mxu0 0.0
    %824 = vmatprep.subr.mxu0 0.0
    %825 = vmatpush2.msra.mxu0 0.0
    %826 = vmatprep.subr.mxu0 0.0
    %827 = vmatpush2.msra.mxu0 0.0
    %828 = vmatprep.subr.mxu0 0.0
    %829 = vmatpush2.msra.mxu0 0.0
    %830 = vmatprep.subr.mxu0 0.0
    %831 = vmatpush2.msra.mxu0 0.0
    %832 = vmatprep.subr.mxu0 0.0
    %833 = vmatpush2.msra.mxu0 0.0
    %834 = vmatprep.subr.mxu0 0.0
    %835 = vmatpush2.msra.mxu0 0.0
    %836 = vmatprep.subr.mxu0 0.0
    %837 = vmatpush2.msra.mxu0 0.0
    %838 = vmatprep.subr.mxu0 0.0
    %839 = vmatpush2.msra.mxu0 0.0
    %840 = vmatprep.subr.mxu0 0.0
    %841 = vmatpush2.msra.mxu0 0.0
    %842 = vmatprep.subr.mxu0 0.0
    %843 = vmatpush2.msra.mxu0 0.0
    %844 = vmatprep.subr.mxu0 0.0
    %845 = vmatpush2.msra.mxu0 0.0
    %846 = vmatprep.subr.mxu0 0.0
    %847 = vmatpush2.msra.mxu0 0.0
    %848 = vmatprep.subr.mxu0 0.0
    %849 = vmatpush2.msra.mxu0 0.0
    %850 = vmatprep.subr.mxu0 0.0
    %851 = vmatpush2.msra.mxu0 0.0
    %852 = vmatprep.mubr.f32.mxu0 0.0
    %853 = vmatmul.mubr.f32.gmra.mxu0 %v262
    %v854 = vpop.f32.mrf.mxu0
    %v855 = vadd.f32 0.0, %v854
    %v856 = vpop.f32.mrf.mxu0
    %857 = vdwg.mxu0
    %s858 = scalar_lea.vmem [#allocation6], 56
    %859 = vst.msk [vmem:[%s858] sm:$0xff] %vm241, %v855
    // Predicated region
    $region18: #{tpu_custom_call.1} parent=1 // pred_check
      _
    $region19: #{tpu_custom_call.1} parent=1 // pred_check_branch
      %861 = sbr.rel (0) target = $region21
    $region20: #{tpu_custom_call.1} parent=1 // pred_region
      %s863 = ssub.s32 1024, 1024
      %864 = vsyncadd [#allocation5], %s863
      %s865 = sshll.u32 [#allocation6], 4
      %s866 = int_to_ptr.vmem [resolvable:$true] %s865
      %871 = dma.vmem_to_hbm [thread:$0]  %s866, 1024, %s3, [#allocation5], 128, 128, 8
    $region21: #{tpu_custom_call.1} parent=1 // pred_fallthru
      _
    // Predicated region
    $region22: #{tpu_custom_call.1} parent=1 // pred_check
      _
    $region23: #{tpu_custom_call.1} parent=1 // pred_check_branch
      %873 = sbr.rel (0) target = $region25
    $region24: #{tpu_custom_call.1} parent=1 // pred_region
      %874 = dma.done [#allocation5], 1024
    $region25: #{tpu_custom_call.1} parent=1 // pred_fallthru
      _
    %875 = vsyncpa [#allocation4], 1
    %876 = vsyncpa [#allocation5], 1

</llo_original>
